<compile_context>
chip_gen: v7x
topology: tpu7x:2x2x1
jax: 0.10.0
libtpu: 0.0.40
codegen_flags: <defaults>
</compile_context>

<pallas_src>
import jax
import jax.numpy as jnp
from jax.experimental import pallas as pl
from jax.experimental.pallas import tpu as pltpu


def _round_up(x, m):
    return ((x + m - 1) // m) * m


def _pick_tile(n, cap=2048):
    """Pick tm == tk for the LGConv matmul: as large as possible (less X
    re-streaming / fewer grid steps) while keeping the zero padding of the
    dense N x N adjacency small (<= ~6% extra rows/cols)."""
    n128 = _round_up(n, 128)
    if n128 <= cap:
        return n128
    for t in range(cap, 127, -128):
        if _round_up(n, t) - n128 <= n128 // 16:
            return t
    return 128


# -----------------------------------------------------------------------------
# Fused LGConv layer (one LightGCN propagation step):
#   acc    = A_norm @ X            (tiled, pipelined MXU matmul, f32 accum)
#   x_next = bf16(acc)             (input to the next layer)
#   sum'   = sum + acc             (f32 running layer sum for the final mean)
# -----------------------------------------------------------------------------
def _lgconv_kernel(a_ref, x_ref, sum_ref, xnext_ref, sumout_ref, acc_ref):
    k = pl.program_id(1)

    @pl.when(k == 0)
    def _init():
        acc_ref[...] = jnp.zeros_like(acc_ref)

    acc_ref[...] += jnp.dot(a_ref[...], x_ref[...],
                            preferred_element_type=jnp.float32)

    @pl.when(k == pl.num_programs(1) - 1)
    def _writeback():
        acc = acc_ref[...]
        xnext_ref[...] = acc.astype(xnext_ref.dtype)     # bf16 next-layer X
        sumout_ref[...] = sum_ref[...] + acc             # f32 running sum


def _lgconv_vmem_bytes(tile, d_pad):
    a = 2 * tile * tile * 2        # A tiles, bf16, double buffered
    x = 2 * tile * d_pad * 2       # X tiles, bf16
    s_in = 2 * tile * d_pad * 4    # layer_sum in, f32
    x_out = 2 * tile * d_pad * 2   # next-layer X out, bf16
    s_out = 2 * tile * d_pad * 4   # layer_sum out, f32
    acc = tile * d_pad * 4         # f32 accumulator scratch
    return a + x + s_in + x_out + s_out + acc


def lgconv_fused(a_bf16, x_bf16, layer_sum_f32, *, tile):
    """One fused LightGCN propagation layer on padded arrays.

    a_bf16        : (n_pad, n_pad) bf16 normalized adjacency.
    x_bf16        : (n_pad, d_pad) bf16 current-layer embeddings.
    layer_sum_f32 : (n_pad, d_pad) f32 running sum of all layers so far.
    Returns (next-layer X in bf16, updated layer sum in f32).
    """
    n_pad = a_bf16.shape[0]
    d_pad = x_bf16.shape[1]
    grid = (n_pad // tile, n_pad // tile)
    vmem_limit = int(min(48 * 2**20,
                         max(16 * 2**20, 2 * _lgconv_vmem_bytes(tile, d_pad))))
    return pl.pallas_call(
        _lgconv_kernel,
        out_shape=(
            jax.ShapeDtypeStruct((n_pad, d_pad), jnp.bfloat16),   # next X
            jax.ShapeDtypeStruct((n_pad, d_pad), jnp.float32),    # layer sum
        ),
        grid_spec=pltpu.PrefetchScalarGridSpec(
            num_scalar_prefetch=0,
            grid=grid,
            in_specs=[
                pl.BlockSpec((tile, tile), lambda i, k: (i, k)),   # A stream
                pl.BlockSpec((tile, d_pad), lambda i, k: (k, 0)),  # X
                pl.BlockSpec((tile, d_pad), lambda i, k: (i, 0)),  # sum in
            ],
            out_specs=[
                pl.BlockSpec((tile, d_pad), lambda i, k: (i, 0)),  # next X
                pl.BlockSpec((tile, d_pad), lambda i, k: (i, 0)),  # sum out
            ],
            scratch_shapes=[pltpu.VMEM((tile, d_pad), jnp.float32)],
        ),
        compiler_params=pltpu.CompilerParams(
            dimension_semantics=("parallel", "arbitrary"),
            vmem_limit_bytes=vmem_limit,
        ),
    )(a_bf16, x_bf16, layer_sum_f32)


def propagate_embeddings(gu_w, gi_w, a_norm, n_layers):
    """Mirrors LightGCNModel.propagate_embeddings (layer-wise mean)."""
    num_users, d = gu_w.shape
    num_items = gi_w.shape[0]
    n = num_users + num_items

    d_pad = _round_up(d, 128)            # lane-dense matmul output columns
    tile = _pick_tile(n)
    n_pad = _round_up(n, tile)

    ego = jnp.concatenate([gu_w, gi_w], axis=0).astype(jnp.float32)
    layer_sum = jnp.zeros((n_pad, d_pad), jnp.float32).at[:n, :d].set(ego)
    x_bf16 = layer_sum.astype(jnp.bfloat16)

    # TODO(synk): adjacency kept dense; production-size graphs need a sparse
    # CSR formulation (scalar-prefetch row offsets + manual double-buffered
    # DMA row gather), and the dominant A stream could be quantized further
    # (fp8 on v7x, int8 + per-row scale on v5e/v6e).
    a_pad = jnp.zeros((n_pad, n_pad), jnp.float32).at[:n, :n].set(a_norm)
    a_bf16 = a_pad.astype(jnp.bfloat16)  # halve dominant HBM stream

    for _ in range(n_layers):
        x_bf16, layer_sum = lgconv_fused(a_bf16, x_bf16, layer_sum, tile=tile)

    mean_emb = (layer_sum / float(n_layers + 1))[:n, :d]
    return mean_emb[:num_users], mean_emb[num_users:]


# -----------------------------------------------------------------------------
# forward: xui = sum(gu * gi, dim=1)  on the natural (batch, dim) layout
# -----------------------------------------------------------------------------
def _forward_kernel(gu_ref, gi_ref, o_ref):
    # gu_ref/gi_ref: (tb, d_pad) f32; reduce over features; (tb, 1) output.
    o_ref[...] = jnp.sum(gu_ref[...] * gi_ref[...], axis=1, keepdims=True)


def lightgcn_forward(gu, gi):
    """Mirrors LightGCNModel.forward: xui = sum(gu * gi, dim=1)."""
    b, d = gu.shape
    d_pad = _round_up(d, 128)
    tb = min(512, _round_up(b, 8))
    b_pad = _round_up(b, tb)

    # Single cheap pad per operand (no transpose materialization).
    gu_p = jnp.zeros((b_pad, d_pad), jnp.float32).at[:b, :d].set(
        gu.astype(jnp.float32))
    gi_p = jnp.zeros((b_pad, d_pad), jnp.float32).at[:b, :d].set(
        gi.astype(jnp.float32))

    out = pl.pallas_call(
        _forward_kernel,
        out_shape=jax.ShapeDtypeStruct((b_pad, 1), jnp.float32),
        grid=(b_pad // tb,),
        in_specs=[
            pl.BlockSpec((tb, d_pad), lambda i: (i, 0)),
            pl.BlockSpec((tb, d_pad), lambda i: (i, 0)),
        ],
        out_specs=pl.BlockSpec((tb, 1), lambda i: (i, 0)),
        compiler_params=pltpu.CompilerParams(
            dimension_semantics=("parallel",)),
    )(gu_p, gi_p)
    return out[:b, 0]


# -----------------------------------------------------------------------------
# Demo / self-check
# -----------------------------------------------------------------------------
if __name__ == "__main__":
    num_users, num_items, emb_dim, n_layers, batch = 8, 8, 32, 2, 4
    n_nodes = num_users + num_items

    key = jax.random.PRNGKey(0)
    k_gu, k_gi, k_adj, k_user, k_pos = jax.random.split(key, 5)

    # Embedding tables (torch.nn.init.normal_(std=0.1) equivalent).
    gu_w = 0.1 * jax.random.normal(k_gu, (num_users, emb_dim), jnp.float32)
    gi_w = 0.1 * jax.random.normal(k_gi, (num_items, emb_dim), jnp.float32)

    # Synthetic bipartite user-item interaction graph, symmetrically
    # normalized (LGConv normalize=True: D^{-1/2} A D^{-1/2}, no self-loops).
    inter = (jax.random.uniform(k_adj, (num_users, num_items)) < 0.3
             ).astype(jnp.float32)
    adj = jnp.zeros((n_nodes, n_nodes), jnp.float32)
    adj = adj.at[:num_users, num_users:].set(inter)
    adj = adj.at[num_users:, :num_users].set(inter.T)
    deg = jnp.sum(adj, axis=1)
    d_inv_sqrt = jnp.where(deg > 0, 1.0 / jnp.sqrt(deg), 0.0)
    a_norm = adj * d_inv_sqrt[:, None] * d_inv_sqrt[None, :]

    # propagate_embeddings: fused Pallas LGConv per layer + running layer sum.
    gu, gi = propagate_embeddings(gu_w, gi_w, a_norm, n_layers)
    jax.block_until_ready((gu, gi))

    # Sanity-check propagation vs plain-JAX f32 reference (bf16-MXU tolerance).
    ego = jnp.concatenate([gu_w, gi_w], axis=0)
    xr, acc = ego, ego
    for _ in range(n_layers):
        xr = a_norm @ xr
        acc = acc + xr
    ref_mean = acc / (n_layers + 1)
    assert jnp.allclose(gu, ref_mean[:num_users], atol=1e-2, rtol=1e-2)
    assert jnp.allclose(gi, ref_mean[num_users:], atol=1e-2, rtol=1e-2)

    # forward on a small batch of (user, pos-item) pairs; gather stays in JAX.
    user = jax.random.randint(k_user, (batch,), 0, num_users)
    pos = jax.random.randint(k_pos, (batch,), 0, num_items)
    xui = lightgcn_forward(gu[user], gi[pos])
    jax.block_until_ready(xui)

    ref = jnp.sum(gu[user] * gi[pos], axis=1)
    assert xui.shape == (batch,)
    assert jnp.allclose(xui, ref, atol=1e-5), (xui, ref)

    print("KERNEL_OK")
</pallas_src>

<mosaic_0001>
module attributes {stable_mosaic.version = 11 : i64} {
  func.func @_lgconv_kernel(%arg0: i32, %arg1: i32, %arg2: memref<128x128xbf16, #tpu.memory_space<vmem>>, %arg3: memref<128x128xbf16, #tpu.memory_space<vmem>>, %arg4: memref<128x128xf32, #tpu.memory_space<vmem>>, %arg5: memref<128x128xbf16, #tpu.memory_space<vmem>>, %arg6: memref<128x128xf32, #tpu.memory_space<vmem>>, %arg7: memref<128x128xf32, #tpu.memory_space<vmem>>) attributes {dimension_semantics = [#tpu.dimension_semantics<parallel>, #tpu.dimension_semantics<arbitrary>], iteration_bounds = array<i64: 1, 1>, scalar_prefetch = 0 : i64, scratch_operands = 1 : i64, tpu.core_type = #tpu.core_type<tc>, window_params = [{transform_indices = @transform_0, window_bounds = array<i64: 128, 128>}, {transform_indices = @transform_1, window_bounds = array<i64: 128, 128>}, {transform_indices = @transform_2, window_bounds = array<i64: 128, 128>}, {transform_indices = @transform_3, window_bounds = array<i64: 128, 128>}, {transform_indices = @transform_4, window_bounds = array<i64: 128, 128>}]} {
    %c0_i32 = arith.constant 0 : i32
    %0 = arith.cmpi eq, %arg1, %c0_i32 : i32
    %1 = arith.extui %0 : i1 to i32
    %c0_i32_0 = arith.constant 0 : i32
    %2 = arith.cmpi ne, %1, %c0_i32_0 : i32
    scf.if %2 {
      %cst_10 = arith.constant 0.000000e+00 : f32
      %12 = vector.broadcast %cst_10 : f32 to vector<128x128xf32>
      %c0_11 = arith.constant 0 : index
      %c0_12 = arith.constant 0 : index
      %13 = vector.load %arg7[%c0_11, %c0_12] : memref<128x128xf32, #tpu.memory_space<vmem>>, vector<128x128xf32>
      tpu.vector_store %arg7[%c0_11, %c0_12], %12 {strides = array<i32>} : memref<128x128xf32, #tpu.memory_space<vmem>>, vector<128x128xf32>,
    } else {
    }
    %c0 = arith.constant 0 : index
    %c0_1 = arith.constant 0 : index
    %3 = vector.load %arg7[%c0, %c0_1] : memref<128x128xf32, #tpu.memory_space<vmem>>, vector<128x128xf32>
    %c0_2 = arith.constant 0 : index
    %c0_3 = arith.constant 0 : index
    %4 = vector.load %arg2[%c0_2, %c0_3] : memref<128x128xbf16, #tpu.memory_space<vmem>>, vector<128x128xbf16>
    %c0_4 = arith.constant 0 : index
    %c0_5 = arith.constant 0 : index
    %5 = vector.load %arg3[%c0_4, %c0_5] : memref<128x128xbf16, #tpu.memory_space<vmem>>, vector<128x128xbf16>
    %cst = arith.constant dense<0.000000e+00> : vector<128x128xf32>
    %6 = tpu.matmul %4, %5, %cst {dimension_numbers = #tpu.dot_dimension_numbers<[1], [0], [0], [1], [0, 0, 1, 1], [], []>} : vector<128x128xbf16>, vector<128x128xbf16>, vector<128x128xf32> -> vector<128x128xf32>
    %7 = arith.addf %3, %6 : vector<128x128xf32>
    %c0_6 = arith.constant 0 : index
    %c0_7 = arith.constant 0 : index
    %8 = vector.load %arg7[%c0_6, %c0_7] : memref<128x128xf32, #tpu.memory_space<vmem>>, vector<128x128xf32>
    tpu.vector_store %arg7[%c0_6, %c0_7], %7 {strides = array<i32>} : memref<128x128xf32, #tpu.memory_space<vmem>>, vector<128x128xf32>,
    %c0_i32_8 = arith.constant 0 : i32
    %9 = arith.cmpi eq, %arg1, %c0_i32_8 : i32
    %10 = arith.extui %9 : i1 to i32
    %c0_i32_9 = arith.constant 0 : i32
    %11 = arith.cmpi ne, %10, %c0_i32_9 : i32
    scf.if %11 {
      %c0_10 = arith.constant 0 : index
      %c0_11 = arith.constant 0 : index
      %12 = vector.load %arg7[%c0_10, %c0_11] : memref<128x128xf32, #tpu.memory_space<vmem>>, vector<128x128xf32>
      %13 = arith.truncf %12 : vector<128x128xf32> to vector<128x128xbf16>
      %c0_12 = arith.constant 0 : index
      %c0_13 = arith.constant 0 : index
      %14 = vector.load %arg5[%c0_12, %c0_13] : memref<128x128xbf16, #tpu.memory_space<vmem>>, vector<128x128xbf16>
      tpu.vector_store %arg5[%c0_12, %c0_13], %13 {strides = array<i32>} : memref<128x128xbf16, #tpu.memory_space<vmem>>, vector<128x128xbf16>,
      %c0_14 = arith.constant 0 : index
      %c0_15 = arith.constant 0 : index
      %15 = vector.load %arg4[%c0_14, %c0_15] : memref<128x128xf32, #tpu.memory_space<vmem>>, vector<128x128xf32>
      %16 = arith.addf %15, %12 : vector<128x128xf32>
      %c0_16 = arith.constant 0 : index
      %c0_17 = arith.constant 0 : index
      %17 = vector.load %arg6[%c0_16, %c0_17] : memref<128x128xf32, #tpu.memory_space<vmem>>, vector<128x128xf32>
      tpu.vector_store %arg6[%c0_16, %c0_17], %16 {strides = array<i32>} : memref<128x128xf32, #tpu.memory_space<vmem>>, vector<128x128xf32>,
    } else {
    }
    return
  }
  func.func @transform_0(%arg0: i32, %arg1: i32) -> (i32, i32) {
    %c0_i32 = arith.constant 0 : i32
    return %arg0, %arg1 : i32, i32
  }
  func.func @transform_1(%arg0: i32, %arg1: i32) -> (i32, i32) {
    %c0_i32 = arith.constant 0 : i32
    %c0_i32_0 = arith.constant 0 : i32
    return %arg1, %c0_i32 : i32, i32
  }
  func.func @transform_2(%arg0: i32, %arg1: i32) -> (i32, i32) {
    %c0_i32 = arith.constant 0 : i32
    %c0_i32_0 = arith.constant 0 : i32
    return %arg0, %c0_i32 : i32, i32
  }
  func.func @transform_3(%arg0: i32, %arg1: i32) -> (i32, i32) {
    %c0_i32 = arith.constant 0 : i32
    %c0_i32_0 = arith.constant 0 : i32
    return %arg0, %c0_i32 : i32, i32
  }
  func.func @transform_4(%arg0: i32, %arg1: i32) -> (i32, i32) {
    %c0_i32 = arith.constant 0 : i32
    %c0_i32_0 = arith.constant 0 : i32
    return %arg0, %c0_i32 : i32, i32
  }
}

</mosaic_0001>

<llo_original>
// kernel: tpu_custom_call.1
$region0: #{tpu_custom_call.1}
  #allocation0 [shape = 'u32[]', space=smem, size = 0x4, offset = 0x4, fixed_abs, tag = 'smem constant byte address 0x4 - core index']
  #allocation1 [shape = 'u32[144,128]{1,0:T(1,128)}', space=vmem, size = 0x12000, scoped, tag = 'internal scratch']
  #allocation2 [shape = 'f32[128,128]{1,0:T(8,128)}', space=vmem, size = 0x10000, scoped, tag = 'scratch operand']
  %s0 = inlined_call_operand.hbm [shape: bf16[128,128], index: 0, kind: input, shape index: {}]
  %s1 = inlined_call_operand.hbm [shape: bf16[128,128], index: 1, kind: input, shape index: {}]
  %s2 = inlined_call_operand.hbm [shape: f32[128,128], index: 2, kind: input, shape index: {}]
  %s3 = inlined_call_operand.hbm [shape: bf16[128,128], index: 3, kind: output, shape index: {0}]
  %s4 = inlined_call_operand.hbm [shape: f32[128,128], index: 4, kind: output, shape index: {1}]
  %5 = xla_tuple %s3, %s4
  %s6 = sld [smem:[#allocation0]]
  $region50: #{tpu_custom_call.1} parent=0
    _
  %s8 = ssub.s32 1, %s6
  %s9 = scalar_select 0, %s8, %s6
  $region1: #{tpu_custom_call.1} parent=0
    #allocation3 [shape = 'u8[32768]{0}', space=vmem, size = 0x8000, scoped, tag = 'input window, operand 0, single buffered']
    #allocation4 [shape = 's32[1]{0}', space=sflag, size = 0x4, scoped, tag = 'scoped memory for tpu_custom_call.1']
    #allocation5 [shape = 's32[1]{0}', space=sflag, size = 0x4, scoped, tag = 'scoped memory for tpu_custom_call.1']
    #allocation6 [shape = 'u8[32768]{0}', space=vmem, size = 0x8000, scoped, tag = 'input window, operand 1, single buffered']
    #allocation7 [shape = 's32[1]{0}', space=sflag, size = 0x4, scoped, tag = 'scoped memory for tpu_custom_call.1']
    #allocation8 [shape = 'u8[65536]{0}', space=vmem, size = 0x10000, scoped, tag = 'input window, operand 2, single buffered']
    #allocation9 [shape = 'u8[32768]{0}', space=vmem, size = 0x8000, scoped, tag = 'output window, operand 0, single buffered']
    #allocation10 [shape = 'u8[65536]{0}', space=vmem, size = 0x10000, scoped, tag = 'output window, operand 1, single buffered']
    #allocation11 [shape = 's32[1]{0}', space=sflag, size = 0x4, scoped, tag = 'scoped memory for tpu_custom_call.1']
    %10 = vsyncpa [#allocation4], 0
    %11 = vsyncpa [#allocation7], 0
    %12 = vsyncpa [#allocation5], 0
    %13 = vsyncpa [#allocation11], 0
    // Predicated region
    $region2: #{tpu_custom_call.1} parent=1 // pred_check
      _
    $region3: #{tpu_custom_call.1} parent=1 // pred_check_branch
      %15 = sbr.rel (0) target = $region5
    $region4: #{tpu_custom_call.1} parent=1 // pred_region
      %s17 = ssub.s32 1024, 1024
      %18 = vsyncadd [#allocation4], %s17
      %s19 = sshll.u32 [#allocation3], 4
      %s20 = int_to_ptr.vmem [resolvable:$true] %s19
      %25 = dma.hbm_to_vmem [thread:$0]  %s0, 1024, %s20, [#allocation4], 64, 64, 4
    $region5: #{tpu_custom_call.1} parent=1 // pred_fallthru
      _
    // Predicated region
    $region6: #{tpu_custom_call.1} parent=1 // pred_check
      _
    $region7: #{tpu_custom_call.1} parent=1 // pred_check_branch
      %27 = sbr.rel (0) target = $region9
    $region8: #{tpu_custom_call.1} parent=1 // pred_region
      %s29 = ssub.s32 1024, 1024
      %30 = vsyncadd [#allocation7], %s29
      %s31 = sshll.u32 [#allocation6], 4
      %s32 = int_to_ptr.vmem [resolvable:$true] %s31
      %37 = dma.hbm_to_vmem [thread:$0]  %s1, 1024, %s32, [#allocation7], 64, 64, 4
    $region9: #{tpu_custom_call.1} parent=1 // pred_fallthru
      _
    // Predicated region
    $region10: #{tpu_custom_call.1} parent=1 // pred_check
      _
    $region11: #{tpu_custom_call.1} parent=1 // pred_check_branch
      %39 = sbr.rel (0) target = $region13
    $region12: #{tpu_custom_call.1} parent=1 // pred_region
      %s41 = ssub.s32 2048, 2048
      %42 = vsyncadd [#allocation7], %s41
      %s43 = sshll.u32 [#allocation8], 4
      %s44 = int_to_ptr.vmem [resolvable:$true] %s43
      %49 = dma.hbm_to_vmem [thread:$0]  %s2, 2048, %s44, [#allocation7], 128, 128, 8
    $region13: #{tpu_custom_call.1} parent=1 // pred_fallthru
      _
    // Predicated region
    $region14: #{tpu_custom_call.1} parent=1 // pred_check
      _
    $region15: #{tpu_custom_call.1} parent=1 // pred_check_branch
      %51 = sbr.rel (0) target = $region17
    $region16: #{tpu_custom_call.1} parent=1 // pred_region
      %52 = dma.done [#allocation4], 1024
    $region17: #{tpu_custom_call.1} parent=1 // pred_fallthru
      _
    // Predicated region
    $region18: #{tpu_custom_call.1} parent=1 // pred_check
      _
    $region19: #{tpu_custom_call.1} parent=1 // pred_check_branch
      %54 = sbr.rel (0) target = $region21
    $region20: #{tpu_custom_call.1} parent=1 // pred_region
      %55 = dma.done [#allocation7], 1024
    $region21: #{tpu_custom_call.1} parent=1 // pred_fallthru
      _
    // Predicated region
    $region22: #{tpu_custom_call.1} parent=1 // pred_check
      _
    $region23: #{tpu_custom_call.1} parent=1 // pred_check_branch
      %57 = sbr.rel (0) target = $region25
    $region24: #{tpu_custom_call.1} parent=1 // pred_region
      %58 = dma.done [#allocation7], 2048
    $region25: #{tpu_custom_call.1} parent=1 // pred_fallthru
      _
    %p60 = scmp.eq.s32.totalorder 0, 0
    // Predicated region
    $region26: #{tpu_custom_call.1} parent=1 // pred_check
      %p61 = pneg %p60
    $region27: #{tpu_custom_call.1} parent=1 // pred_check_branch
      %63 = sbr.rel (%p61) target = $region29
    $region28: #{tpu_custom_call.1} parent=1 // pred_region
      %64 = vst [vmem:[#allocation2] sm:$0xff] 0.0
      %65 = vst [vmem:[#allocation2 + $0x8] sm:$0xff] 0.0
      %66 = vst [vmem:[#allocation2 + $0x10] sm:$0xff] 0.0
      %67 = vst [vmem:[#allocation2 + $0x18] sm:$0xff] 0.0
      %68 = vst [vmem:[#allocation2 + $0x20] sm:$0xff] 0.0
      %69 = vst [vmem:[#allocation2 + $0x28] sm:$0xff] 0.0
      %70 = vst [vmem:[#allocation2 + $0x30] sm:$0xff] 0.0
      %71 = vst [vmem:[#allocation2 + $0x38] sm:$0xff] 0.0
      %72 = vst [vmem:[#allocation2 + $0x40] sm:$0xff] 0.0
      %73 = vst [vmem:[#allocation2 + $0x48] sm:$0xff] 0.0
      %74 = vst [vmem:[#allocation2 + $0x50] sm:$0xff] 0.0
      %75 = vst [vmem:[#allocation2 + $0x58] sm:$0xff] 0.0
      %76 = vst [vmem:[#allocation2 + $0x60] sm:$0xff] 0.0
      %77 = vst [vmem:[#allocation2 + $0x68] sm:$0xff] 0.0
      %78 = vst [vmem:[#allocation2 + $0x70] sm:$0xff] 0.0
      %79 = vst [vmem:[#allocation2 + $0x78] sm:$0xff] 0.0
    $region29: #{tpu_custom_call.1} parent=1 // pred_fallthru
      _
    %v80 = vld [vmem:[#allocation2] sm:$0xff]
    %v81 = vld [vmem:[#allocation2 + $0x8] sm:$0xff]
    %v82 = vld [vmem:[#allocation2 + $0x10] sm:$0xff]
    %v83 = vld [vmem:[#allocation2 + $0x18] sm:$0xff]
    %v84 = vld [vmem:[#allocation2 + $0x20] sm:$0xff]
    %v85 = vld [vmem:[#allocation2 + $0x28] sm:$0xff]
    %v86 = vld [vmem:[#allocation2 + $0x30] sm:$0xff]
    %v87 = vld [vmem:[#allocation2 + $0x38] sm:$0xff]
    %v88 = vld [vmem:[#allocation2 + $0x40] sm:$0xff]
    %v89 = vld [vmem:[#allocation2 + $0x48] sm:$0xff]
    %v90 = vld [vmem:[#allocation2 + $0x50] sm:$0xff]
    %v91 = vld [vmem:[#allocation2 + $0x58] sm:$0xff]
    %v92 = vld [vmem:[#allocation2 + $0x60] sm:$0xff]
    %v93 = vld [vmem:[#allocation2 + $0x68] sm:$0xff]
    %v94 = vld [vmem:[#allocation2 + $0x70] sm:$0xff]
    %v95 = vld [vmem:[#allocation2 + $0x78] sm:$0xff]
    %v96 = vld [vmem:[#allocation3] sm:$0xf]
    %v97 = vld [vmem:[#allocation3 + $0x4] sm:$0xf]
    %v98 = vld [vmem:[#allocation3 + $0x8] sm:$0xf]
    %v99 = vld [vmem:[#allocation3 + $0xc] sm:$0xf]
    %v100 = vld [vmem:[#allocation3 + $0x10] sm:$0xf]
    %v101 = vld [vmem:[#allocation3 + $0x14] sm:$0xf]
    %v102 = vld [vmem:[#allocation3 + $0x18] sm:$0xf]
    %v103 = vld [vmem:[#allocation3 + $0x1c] sm:$0xf]
    %v104 = vld [vmem:[#allocation3 + $0x20] sm:$0xf]
    %v105 = vld [vmem:[#allocation3 + $0x24] sm:$0xf]
    %v106 = vld [vmem:[#allocation3 + $0x28] sm:$0xf]
    %v107 = vld [vmem:[#allocation3 + $0x2c] sm:$0xf]
    %v108 = vld [vmem:[#allocation3 + $0x30] sm:$0xf]
    %v109 = vld [vmem:[#allocation3 + $0x34] sm:$0xf]
    %v110 = vld [vmem:[#allocation3 + $0x38] sm:$0xf]
    %v111 = vld [vmem:[#allocation3 + $0x3c] sm:$0xf]
    %v112 = vld [vmem:[#allocation6] sm:$0xf]
    %v113 = vld [vmem:[#allocation6 + $0x4] sm:$0xf]
    %v114 = vld [vmem:[#allocation6 + $0x8] sm:$0xf]
    %v115 = vld [vmem:[#allocation6 + $0xc] sm:$0xf]
    %v116 = vld [vmem:[#allocation6 + $0x10] sm:$0xf]
    %v117 = vld [vmem:[#allocation6 + $0x14] sm:$0xf]
    %v118 = vld [vmem:[#allocation6 + $0x18] sm:$0xf]
    %v119 = vld [vmem:[#allocation6 + $0x1c] sm:$0xf]
    %v120 = vld [vmem:[#allocation6 + $0x20] sm:$0xf]
    %v121 = vld [vmem:[#allocation6 + $0x24] sm:$0xf]
    %v122 = vld [vmem:[#allocation6 + $0x28] sm:$0xf]
    %v123 = vld [vmem:[#allocation6 + $0x2c] sm:$0xf]
    %v124 = vld [vmem:[#allocation6 + $0x30] sm:$0xf]
    %v125 = vld [vmem:[#allocation6 + $0x34] sm:$0xf]
    %v126 = vld [vmem:[#allocation6 + $0x38] sm:$0xf]
    %v127 = vld [vmem:[#allocation6 + $0x3c] sm:$0xf]
    %v144 = vunpack.c.l.b16 %v96
    %v145 = vunpack.c.l.b16 %v97
    %v146 = vunpack.c.l.b16 %v98
    %v147 = vunpack.c.l.b16 %v99
    %v148 = vunpack.c.l.b16 %v100
    %v149 = vunpack.c.l.b16 %v101
    %v150 = vunpack.c.l.b16 %v102
    %v151 = vunpack.c.l.b16 %v103
    %v152 = vunpack.c.l.b16 %v104
    %v153 = vunpack.c.l.b16 %v105
    %v154 = vunpack.c.l.b16 %v106
    %v155 = vunpack.c.l.b16 %v107
    %v156 = vunpack.c.l.b16 %v108
    %v157 = vunpack.c.l.b16 %v109
    %v158 = vunpack.c.l.b16 %v110
    %v159 = vunpack.c.l.b16 %v111
    %v160 = vpack.c.b16 %v145, %v144
    %v161 = vpack.c.b16 %v147, %v146
    %v162 = vpack.c.b16 %v149, %v148
    %v163 = vpack.c.b16 %v151, %v150
    %v164 = vpack.c.b16 %v153, %v152
    %v165 = vpack.c.b16 %v155, %v154
    %v166 = vpack.c.b16 %v157, %v156
    %v167 = vpack.c.b16 %v159, %v158
    %v192 = vunpack.c.l.b16 %v112
    %v193 = vunpack.c.l.b16 %v113
    %v194 = vunpack.c.l.b16 %v114
    %v195 = vunpack.c.l.b16 %v115
    %v196 = vunpack.c.l.b16 %v116
    %v197 = vunpack.c.l.b16 %v117
    %v198 = vunpack.c.l.b16 %v118
    %v199 = vunpack.c.l.b16 %v119
    %v200 = vunpack.c.l.b16 %v120
    %v201 = vunpack.c.l.b16 %v121
    %v202 = vunpack.c.l.b16 %v122
    %v203 = vunpack.c.l.b16 %v123
    %v204 = vunpack.c.l.b16 %v124
    %v205 = vunpack.c.l.b16 %v125
    %v206 = vunpack.c.l.b16 %v126
    %v207 = vunpack.c.l.b16 %v127
    %v208 = vpack.c.b16 %v193, %v192
    %v209 = vpack.c.b16 %v195, %v194
    %v210 = vpack.c.b16 %v197, %v196
    %v211 = vpack.c.b16 %v199, %v198
    %v212 = vpack.c.b16 %v201, %v200
    %v213 = vpack.c.b16 %v203, %v202
    %v214 = vpack.c.b16 %v205, %v204
    %v215 = vpack.c.b16 %v207, %v206
    %224 = vmatprep.subr.bf16.mxu0 0
    %225 = vmatpush1.bf16.msra.mxu0 %v208
    %226 = vmatprep.subr.bf16.mxu0 0
    %227 = vmatpush1.bf16.msra.mxu0 %v209
    %228 = vmatprep.subr.bf16.mxu0 0
    %229 = vmatpush1.bf16.msra.mxu0 %v210
    %230 = vmatprep.subr.bf16.mxu0 0
    %231 = vmatpush1.bf16.msra.mxu0 %v211
    %232 = vmatprep.subr.bf16.mxu0 0
    %233 = vmatpush1.bf16.msra.mxu0 %v212
    %234 = vmatprep.subr.bf16.mxu0 0
    %235 = vmatpush1.bf16.msra.mxu0 %v213
    %236 = vmatprep.subr.bf16.mxu0 0
    %237 = vmatpush1.bf16.msra.mxu0 %v214
    %238 = vmatprep.subr.bf16.mxu0 0
    %239 = vmatpush1.bf16.msra.mxu0 %v215
    %240 = vmatprep.subr.bf16.mxu0 0
    %241 = vmatpush1.bf16.msra.mxu0 0
    %242 = vmatprep.subr.bf16.mxu0 0
    %243 = vmatpush1.bf16.msra.mxu0 0
    %244 = vmatprep.subr.bf16.mxu0 0
    %245 = vmatpush1.bf16.msra.mxu0 0
    %246 = vmatprep.subr.bf16.mxu0 0
    %247 = vmatpush1.bf16.msra.mxu0 0
    %248 = vmatprep.subr.bf16.mxu0 0
    %249 = vmatpush1.bf16.msra.mxu0 0
    %250 = vmatprep.subr.bf16.mxu0 0
    %251 = vmatpush1.bf16.msra.mxu0 0
    %252 = vmatprep.subr.bf16.mxu0 0
    %253 = vmatpush1.bf16.msra.mxu0 0
    %254 = vmatprep.subr.bf16.mxu0 0
    %255 = vmatpush1.bf16.msra.mxu0 0
    %256 = vmatprep.mubr.bf16.mxu0 0
    %257 = vmatmul.mubr.bf16.gmra.mrb[0].mxu0 %v160
    %v258 = vpop.f32.mrb[0].mxu0
    %v259 = vadd.f32 0.0, %v258
    %v260 = vpop.f32.mrb[0].mxu0
    %v261 = vpop.f32.mrb[0].mxu0
    %v262 = vadd.f32 0.0, %v261
    %v263 = vpop.f32.mrb[0].mxu0
    %264 = vmatprep.mubr.bf16.mxu0 0
    %265 = vmatmul.mubr.bf16.gmra.mrb[0].mxu0 %v161
    %v266 = vpop.f32.mrb[0].mxu0
    %v267 = vadd.f32 0.0, %v266
    %v268 = vpop.f32.mrb[0].mxu0
    %v269 = vpop.f32.mrb[0].mxu0
    %v270 = vadd.f32 0.0, %v269
    %v271 = vpop.f32.mrb[0].mxu0
    %272 = vmatprep.mubr.bf16.mxu0 0
    %273 = vmatmul.mubr.bf16.gmra.mrb[0].mxu0 %v162
    %v274 = vpop.f32.mrb[0].mxu0
    %v275 = vadd.f32 0.0, %v274
    %v276 = vpop.f32.mrb[0].mxu0
    %v277 = vpop.f32.mrb[0].mxu0
    %v278 = vadd.f32 0.0, %v277
    %v279 = vpop.f32.mrb[0].mxu0
    %280 = vmatprep.mubr.bf16.mxu0 0
    %281 = vmatmul.mubr.bf16.gmra.mrb[0].mxu0 %v163
    %v282 = vpop.f32.mrb[0].mxu0
    %v283 = vadd.f32 0.0, %v282
    %v284 = vpop.f32.mrb[0].mxu0
    %v285 = vpop.f32.mrb[0].mxu0
    %v286 = vadd.f32 0.0, %v285
    %v287 = vpop.f32.mrb[0].mxu0
    %288 = vmatprep.mubr.bf16.mxu0 0
    %289 = vmatmul.mubr.bf16.gmra.mrb[0].mxu0 %v164
    %v290 = vpop.f32.mrb[0].mxu0
    %v291 = vadd.f32 0.0, %v290
    %v292 = vpop.f32.mrb[0].mxu0
    %v293 = vpop.f32.mrb[0].mxu0
    %v294 = vadd.f32 0.0, %v293
    %v295 = vpop.f32.mrb[0].mxu0
    %296 = vmatprep.mubr.bf16.mxu0 0
    %297 = vmatmul.mubr.bf16.gmra.mrb[0].mxu0 %v165
    %v298 = vpop.f32.mrb[0].mxu0
    %v299 = vadd.f32 0.0, %v298
    %v300 = vpop.f32.mrb[0].mxu0
    %v301 = vpop.f32.mrb[0].mxu0
    %v302 = vadd.f32 0.0, %v301
    %v303 = vpop.f32.mrb[0].mxu0
    %304 = vmatprep.mubr.bf16.mxu0 0
    %305 = vmatmul.mubr.bf16.gmra.mrb[0].mxu0 %v166
    %v306 = vpop.f32.mrb[0].mxu0
    %v307 = vadd.f32 0.0, %v306
    %v308 = vpop.f32.mrb[0].mxu0
    %v309 = vpop.f32.mrb[0].mxu0
    %v310 = vadd.f32 0.0, %v309
    %v311 = vpop.f32.mrb[0].mxu0
    %312 = vmatprep.mubr.bf16.mxu0 0
    %313 = vmatmul.mubr.bf16.gmra.mrb[0].mxu0 %v167
    %v314 = vpop.f32.mrb[0].mxu0
    %v315 = vadd.f32 0.0, %v314
    %v316 = vpop.f32.mrb[0].mxu0
    %v317 = vpop.f32.mrb[0].mxu0
    %v318 = vadd.f32 0.0, %v317
    %v319 = vpop.f32.mrb[0].mxu0
    %320 = vdwg.mxu0
    %v321 = vadd.f32 %v80, %v259
    %v322 = vadd.f32 %v81, %v262
    %v323 = vadd.f32 %v82, %v267
    %v324 = vadd.f32 %v83, %v270
    %v325 = vadd.f32 %v84, %v275
    %v326 = vadd.f32 %v85, %v278
    %v327 = vadd.f32 %v86, %v283
    %v328 = vadd.f32 %v87, %v286
    %v329 = vadd.f32 %v88, %v291
    %v330 = vadd.f32 %v89, %v294
    %v331 = vadd.f32 %v90, %v299
    %v332 = vadd.f32 %v91, %v302
    %v333 = vadd.f32 %v92, %v307
    %v334 = vadd.f32 %v93, %v310
    %v335 = vadd.f32 %v94, %v315
    %v336 = vadd.f32 %v95, %v318
    %337 = vst [vmem:[#allocation2] sm:$0xff] %v321
    %338 = vst [vmem:[#allocation2 + $0x8] sm:$0xff] %v322
    %339 = vst [vmem:[#allocation2 + $0x10] sm:$0xff] %v323
    %340 = vst [vmem:[#allocation2 + $0x18] sm:$0xff] %v324
    %341 = vst [vmem:[#allocation2 + $0x20] sm:$0xff] %v325
    %342 = vst [vmem:[#allocation2 + $0x28] sm:$0xff] %v326
    %343 = vst [vmem:[#allocation2 + $0x30] sm:$0xff] %v327
    %344 = vst [vmem:[#allocation2 + $0x38] sm:$0xff] %v328
    %345 = vst [vmem:[#allocation2 + $0x40] sm:$0xff] %v329
    %346 = vst [vmem:[#allocation2 + $0x48] sm:$0xff] %v330
    %347 = vst [vmem:[#allocation2 + $0x50] sm:$0xff] %v331
    %348 = vst [vmem:[#allocation2 + $0x58] sm:$0xff] %v332
    %349 = vst [vmem:[#allocation2 + $0x60] sm:$0xff] %v333
    %350 = vst [vmem:[#allocation2 + $0x68] sm:$0xff] %v334
    %351 = vst [vmem:[#allocation2 + $0x70] sm:$0xff] %v335
    %352 = vst [vmem:[#allocation2 + $0x78] sm:$0xff] %v336
    // Predicated region
    $region30: #{tpu_custom_call.1} parent=1 // pred_check
      %p353 = pneg %p60
    $region31: #{tpu_custom_call.1} parent=1 // pred_check_branch
      %355 = sbr.rel (%p353) target = $region33
    $region32: #{tpu_custom_call.1} parent=1 // pred_region
      %v356 = vld [vmem:[#allocation2] sm:$0xff]
      %v357 = vld [vmem:[#allocation2 + $0x8] sm:$0xff]
      %v358 = vld [vmem:[#allocation2 + $0x10] sm:$0xff]
      %v359 = vld [vmem:[#allocation2 + $0x18] sm:$0xff]
      %v360 = vld [vmem:[#allocation2 + $0x20] sm:$0xff]
      %v361 = vld [vmem:[#allocation2 + $0x28] sm:$0xff]
      %v362 = vld [vmem:[#allocation2 + $0x30] sm:$0xff]
      %v363 = vld [vmem:[#allocation2 + $0x38] sm:$0xff]
      %v364 = vld [vmem:[#allocation2 + $0x40] sm:$0xff]
      %v365 = vld [vmem:[#allocation2 + $0x48] sm:$0xff]
      %v366 = vld [vmem:[#allocation2 + $0x50] sm:$0xff]
      %v367 = vld [vmem:[#allocation2 + $0x58] sm:$0xff]
      %v368 = vld [vmem:[#allocation2 + $0x60] sm:$0xff]
      %v369 = vld [vmem:[#allocation2 + $0x68] sm:$0xff]
      %v370 = vld [vmem:[#allocation2 + $0x70] sm:$0xff]
      %v371 = vld [vmem:[#allocation2 + $0x78] sm:$0xff]
      %v372 = vpack.c.bf16 %v357, %v356
      %v373 = vpack.c.bf16 %v359, %v358
      %v374 = vpack.c.bf16 %v361, %v360
      %v375 = vpack.c.bf16 %v363, %v362
      %v376 = vpack.c.bf16 %v365, %v364
      %v377 = vpack.c.bf16 %v367, %v366
      %v378 = vpack.c.bf16 %v369, %v368
      %v379 = vpack.c.bf16 %v371, %v370
      %v388 = vunpack.c.l.b16 %v372
      %v389 = vunpack.c.h.b16 %v372
      %v390 = vunpack.c.l.b16 %v373
      %v391 = vunpack.c.h.b16 %v373
      %v392 = vunpack.c.l.b16 %v374
      %v393 = vunpack.c.h.b16 %v374
      %v394 = vunpack.c.l.b16 %v375
      %v395 = vunpack.c.h.b16 %v375
      %v396 = vunpack.c.l.b16 %v376
      %v397 = vunpack.c.h.b16 %v376
      %v398 = vunpack.c.l.b16 %v377
      %v399 = vunpack.c.h.b16 %v377
      %v400 = vunpack.c.l.b16 %v378
      %v401 = vunpack.c.h.b16 %v378
      %v402 = vunpack.c.l.b16 %v379
      %v403 = vunpack.c.h.b16 %v379
      %v404 = vpack.c.b16 %v388, %v388
      %v405 = vpack.c.b16 %v389, %v389
      %v406 = vpack.c.b16 %v390, %v390
      %v407 = vpack.c.b16 %v391, %v391
      %v408 = vpack.c.b16 %v392, %v392
      %v409 = vpack.c.b16 %v393, %v393
      %v410 = vpack.c.b16 %v394, %v394
      %v411 = vpack.c.b16 %v395, %v395
      %v412 = vpack.c.b16 %v396, %v396
      %v413 = vpack.c.b16 %v397, %v397
      %v414 = vpack.c.b16 %v398, %v398
      %v415 = vpack.c.b16 %v399, %v399
      %v416 = vpack.c.b16 %v400, %v400
      %v417 = vpack.c.b16 %v401, %v401
      %v418 = vpack.c.b16 %v402, %v402
      %v419 = vpack.c.b16 %v403, %v403
      %436 = vst [vmem:[#allocation9] sm:$0xf] %v404
      %437 = vst [vmem:[#allocation9 + $0x4] sm:$0xf] %v405
      %438 = vst [vmem:[#allocation9 + $0x8] sm:$0xf] %v406
      %439 = vst [vmem:[#allocation9 + $0xc] sm:$0xf] %v407
      %440 = vst [vmem:[#allocation9 + $0x10] sm:$0xf] %v408
      %441 = vst [vmem:[#allocation9 + $0x14] sm:$0xf] %v409
      %442 = vst [vmem:[#allocation9 + $0x18] sm:$0xf] %v410
      %443 = vst [vmem:[#allocation9 + $0x1c] sm:$0xf] %v411
      %444 = vst [vmem:[#allocation9 + $0x20] sm:$0xf] %v412
      %445 = vst [vmem:[#allocation9 + $0x24] sm:$0xf] %v413
      %446 = vst [vmem:[#allocation9 + $0x28] sm:$0xf] %v414
      %447 = vst [vmem:[#allocation9 + $0x2c] sm:$0xf] %v415
      %448 = vst [vmem:[#allocation9 + $0x30] sm:$0xf] %v416
      %449 = vst [vmem:[#allocation9 + $0x34] sm:$0xf] %v417
      %450 = vst [vmem:[#allocation9 + $0x38] sm:$0xf] %v418
      %451 = vst [vmem:[#allocation9 + $0x3c] sm:$0xf] %v419
      %v452 = vld [vmem:[#allocation8] sm:$0xff]
      %v453 = vld [vmem:[#allocation8 + $0x8] sm:$0xff]
      %v454 = vld [vmem:[#allocation8 + $0x10] sm:$0xff]
      %v455 = vld [vmem:[#allocation8 + $0x18] sm:$0xff]
      %v456 = vld [vmem:[#allocation8 + $0x20] sm:$0xff]
      %v457 = vld [vmem:[#allocation8 + $0x28] sm:$0xff]
      %v458 = vld [vmem:[#allocation8 + $0x30] sm:$0xff]
      %v459 = vld [vmem:[#allocation8 + $0x38] sm:$0xff]
      %v460 = vld [vmem:[#allocation8 + $0x40] sm:$0xff]
      %v461 = vld [vmem:[#allocation8 + $0x48] sm:$0xff]
      %v462 = vld [vmem:[#allocation8 + $0x50] sm:$0xff]
      %v463 = vld [vmem:[#allocation8 + $0x58] sm:$0xff]
      %v464 = vld [vmem:[#allocation8 + $0x60] sm:$0xff]
      %v465 = vld [vmem:[#allocation8 + $0x68] sm:$0xff]
      %v466 = vld [vmem:[#allocation8 + $0x70] sm:$0xff]
      %v467 = vld [vmem:[#allocation8 + $0x78] sm:$0xff]
      %v468 = vadd.f32 %v452, %v356
      %v469 = vadd.f32 %v453, %v357
      %v470 = vadd.f32 %v454, %v358
      %v471 = vadd.f32 %v455, %v359
      %v472 = vadd.f32 %v456, %v360
      %v473 = vadd.f32 %v457, %v361
      %v474 = vadd.f32 %v458, %v362
      %v475 = vadd.f32 %v459, %v363
      %v476 = vadd.f32 %v460, %v364
      %v477 = vadd.f32 %v461, %v365
      %v478 = vadd.f32 %v462, %v366
      %v479 = vadd.f32 %v463, %v367
      %v480 = vadd.f32 %v464, %v368
      %v481 = vadd.f32 %v465, %v369
      %v482 = vadd.f32 %v466, %v370
      %v483 = vadd.f32 %v467, %v371
      %484 = vst [vmem:[#allocation10] sm:$0xff] %v468
      %485 = vst [vmem:[#allocation10 + $0x8] sm:$0xff] %v469
      %486 = vst [vmem:[#allocation10 + $0x10] sm:$0xff] %v470
      %487 = vst [vmem:[#allocation10 + $0x18] sm:$0xff] %v471
      %488 = vst [vmem:[#allocation10 + $0x20] sm:$0xff] %v472
      %489 = vst [vmem:[#allocation10 + $0x28] sm:$0xff] %v473
      %490 = vst [vmem:[#allocation10 + $0x30] sm:$0xff] %v474
      %491 = vst [vmem:[#allocation10 + $0x38] sm:$0xff] %v475
      %492 = vst [vmem:[#allocation10 + $0x40] sm:$0xff] %v476
      %493 = vst [vmem:[#allocation10 + $0x48] sm:$0xff] %v477
      %494 = vst [vmem:[#allocation10 + $0x50] sm:$0xff] %v478
      %495 = vst [vmem:[#allocation10 + $0x58] sm:$0xff] %v479
      %496 = vst [vmem:[#allocation10 + $0x60] sm:$0xff] %v480
      %497 = vst [vmem:[#allocation10 + $0x68] sm:$0xff] %v481
      %498 = vst [vmem:[#allocation10 + $0x70] sm:$0xff] %v482
      %499 = vst [vmem:[#allocation10 + $0x78] sm:$0xff] %v483
    $region33: #{tpu_custom_call.1} parent=1 // pred_fallthru
      _
    // Predicated region
    $region34: #{tpu_custom_call.1} parent=1 // pred_check
      _
    $region35: #{tpu_custom_call.1} parent=1 // pred_check_branch
      %501 = sbr.rel (0) target = $region37
    $region36: #{tpu_custom_call.1} parent=1 // pred_region
      %s503 = ssub.s32 1024, 1024
      %504 = vsyncadd [#allocation5], %s503
      %s505 = sshll.u32 [#allocation9], 4
      %s506 = int_to_ptr.vmem [resolvable:$true] %s505
      %511 = dma.vmem_to_hbm [thread:$0]  %s506, 1024, %s3, [#allocation5], 64, 64, 4
    $region37: #{tpu_custom_call.1} parent=1 // pred_fallthru
      _
    // Predicated region
    $region38: #{tpu_custom_call.1} parent=1 // pred_check
      _
    $region39: #{tpu_custom_call.1} parent=1 // pred_check_branch
      %513 = sbr.rel (0) target = $region41
    $region40: #{tpu_custom_call.1} parent=1 // pred_region
      %s515 = ssub.s32 2048, 2048
      %516 = vsyncadd [#allocation11], %s515
      %s517 = sshll.u32 [#allocation10], 4
      %s518 = int_to_ptr.vmem [resolvable:$true] %s517
      %523 = dma.vmem_to_hbm [thread:$0]  %s518, 2048, %s4, [#allocation11], 128, 128, 8
    $region41: #{tpu_custom_call.1} parent=1 // pred_fallthru
      _
    // Predicated region
    $region42: #{tpu_custom_call.1} parent=1 // pred_check
      _
    $region43: #{tpu_custom_call.1} parent=1 // pred_check_branch
      %525 = sbr.rel (0) target = $region45
    $region44: #{tpu_custom_call.1} parent=1 // pred_region
      %526 = dma.done [#allocation5], 1024
    $region45: #{tpu_custom_call.1} parent=1 // pred_fallthru
      _
    // Predicated region
    $region46: #{tpu_custom_call.1} parent=1 // pred_check
      _
    $region47: #{tpu_custom_call.1} parent=1 // pred_check_branch
      %528 = sbr.rel (0) target = $region49
    $region48: #{tpu_custom_call.1} parent=1 // pred_region
      %529 = dma.done [#allocation11], 2048
    $region49: #{tpu_custom_call.1} parent=1 // pred_fallthru
      _
    %530 = vsyncpa [#allocation4], 1
    %531 = vsyncpa [#allocation7], 1
    %532 = vsyncpa [#allocation5], 1
    %533 = vsyncpa [#allocation11], 1

</llo_original>
